<compile_context>
chip_gen: v5e
topology: v5e:2x2
jax: 0.10.0
libtpu: 0.0.40
codegen_flags: <defaults>
</compile_context>

<pallas_src>
import functools

import jax
import jax.numpy as jnp
from jax import lax
from jax.experimental import pallas as pl
from jax.experimental.pallas import tpu as pltpu


def _conv3x3_kernel(x_ref, w_ref, b_ref, o_ref, *, img_rows):
    """One fused-K matmul for a whole-image row block.

    x_ref: (TM, W*Cin)        bf16 activations, TM = Nb*img_rows (whole images)
    w_ref: (3*W*Cin, W*Cout)  bf16 banded weights, kh-major along K
    b_ref: (1, W*Cout)        f32 bias tiled across W
    o_ref: (TM, W*Cout)       output rows (lane-dense stores)
    """
    x2d = x_ref[...]
    tm, wc = x2d.shape

    # Row-shifted copies: up[r] = x2d[r-1], dn[r] = x2d[r+1]; rows outside the
    # current image must be zero.  These lower to sublane shifts + zero fill.
    zero_row = jnp.zeros((1, wc), dtype=x2d.dtype)
    up = jnp.concatenate([zero_row, x2d[:-1, :]], axis=0)
    dn = jnp.concatenate([x2d[1:, :], zero_row], axis=0)

    if tm > img_rows:  # more than one image in the block: mask image boundaries
        h = lax.broadcasted_iota(jnp.int32, (tm, wc), 0) % img_rows
        up = jnp.where(h != 0, up, jnp.zeros_like(up))
        dn = jnp.where(h != img_rows - 1, dn, jnp.zeros_like(dn))

    # Fuse the three kh taps along K: one MXU matmul, K = 3*W*Cin, f32 acc.
    lhs = jnp.concatenate([up, x2d, dn], axis=1)              # (TM, 3*W*Cin)
    acc = jnp.dot(lhs, w_ref[...], preferred_element_type=jnp.float32)
    acc = acc + b_ref[...]                                    # (1, W*Cout) bcast
    o_ref[...] = acc.astype(o_ref.dtype)                      # lane-dense store


def prepare_conv_params(weight, bias, width, mxu_dtype=jnp.bfloat16):
    """(Cout, Cin, 3, 3), (Cout,) -> banded weight (3*W*Cin, W*Cout) + tiled bias.

    T[(kh*W + w_in)*Cin + ci, w*Cout + co] = weight[co, ci, kh, kw] iff w_in == w + kw - 1
    (zero otherwise): the kw column shifts and the width zero-padding are folded
    into the weights, so the kernel never slices/shifts along W at all.
    HOISTED: call once per weight set, reuse across forwards.

    TODO(synk): band density is 3/W -> once Cin/Cout are large enough to be
    MXU-bound, switch to a per-tap K=Cin schedule (crossover earliest on v5e).
    """
    cout, cin, _, _ = weight.shape
    wt = jnp.transpose(weight, (2, 3, 1, 0))                       # (3, 3, Cin, Cout)
    bands = jnp.stack([jnp.eye(width, k=1 - kw, dtype=weight.dtype)
                       for kw in range(3)])                        # (3, W_in, W)
    t = jnp.einsum('kab,hkcd->hacbd', bands, wt)                   # (3, W, Cin, W, Cout)
    w_band = t.reshape(3 * width * cin, width * cout).astype(mxu_dtype)
    b_row = jnp.tile(bias, width).reshape(1, width * cout).astype(jnp.float32)
    return w_band, b_row


def _pick_block_images(n, img_rows, target_rows=512):
    """Largest divisor Nb of n with Nb*img_rows <= target rows (sublane-aligned)."""
    best = n                                   # whole batch in one block is always legal
    limit = max(target_rows, img_rows)
    for nb in range(1, n + 1):
        if n % nb:
            continue
        if nb != n and (nb * img_rows) % 8:    # keep row blocks 8-divisible when tiled
            continue
        if nb * img_rows <= limit:
            best = nb
    return best


def conv3x3_flat(x2d, w_band, b_row, *, img_rows, block_images, out_dtype):
    """x2d: (N*H, W*Cin) bf16, whole-image row blocks. Returns (N*H, W*Cout)."""
    m_total, wc = x2d.shape
    k3, wco = w_band.shape
    tm = block_images * img_rows
    kernel = functools.partial(_conv3x3_kernel, img_rows=img_rows)
    # TODO(synk): v7x (64 MiB VMEM) at large W/Cout: tile w_band over a Cout grid
    # axis and single-buffer it (pipeline_mode=pl.Buffered(1), constant index_map);
    # also split rows over a second parallel axis so both TCs stay busy when N==1.
    # Neither is needed at these shapes.
    return pl.pallas_call(
        kernel,
        out_shape=jax.ShapeDtypeStruct((m_total, wco), out_dtype),
        grid_spec=pltpu.PrefetchScalarGridSpec(
            num_scalar_prefetch=0,
            grid=(m_total // tm,),
            in_specs=[
                pl.BlockSpec((tm, wc), lambda i: (i, 0)),
                pl.BlockSpec((k3, wco), lambda i: (0, 0)),
                pl.BlockSpec((1, wco), lambda i: (0, 0)),
            ],
            out_specs=pl.BlockSpec((tm, wco), lambda i: (i, 0)),
        ),
        compiler_params=pltpu.CompilerParams(
            dimension_semantics=("parallel",),       # row blocks are independent
            vmem_limit_bytes=32 * 1024 * 1024,       # real raise on v5e (16 MiB default)
        ),
    )(x2d, w_band, b_row)


def normal_conv2d(x_nchw, w_band, b_row):
    """NCHW boundary wrapper matching nn.Conv2d(kernel_size=3, padding=1).

    TODO(synk): in a full NHWC network keep activations in the flattened
    (N*H, W*C) bf16 layout end-to-end and call conv3x3_flat directly; each of
    these two transposes is an HBM round trip comparable to the conv itself.
    """
    n, cin, h, w = x_nchw.shape
    cout = b_row.shape[-1] // w
    # NCHW -> NHWC with the bf16 cast fused into the transpose write.
    x2d = jnp.transpose(x_nchw, (0, 2, 3, 1)).astype(jnp.bfloat16).reshape(n * h, w * cin)
    nb = _pick_block_images(n, h)
    out2d = conv3x3_flat(x2d, w_band, b_row, img_rows=h, block_images=nb,
                         out_dtype=x_nchw.dtype)
    # (N*H, W*Cout) -> (N, H, W, Cout) is a free reshape (same bytes) -> NCHW.
    return jnp.transpose(out2d.reshape(n, h, w, cout), (0, 3, 1, 2))


if __name__ == "__main__":
    key = jax.random.PRNGKey(0)
    kx, kw_key, kb = jax.random.split(key, 3)

    N, Cin, Cout, H, W = 2, 4, 8, 16, 16

    x = jax.random.normal(kx, (N, Cin, H, W), dtype=jnp.float32)
    # Deterministic synthetic parameters (Conv2d weight shape: (Cout, Cin, 3, 3))
    fan_in = Cin * 3 * 3
    bound = 1.0 / (fan_in ** 0.5)
    weight = jax.random.uniform(kw_key, (Cout, Cin, 3, 3), jnp.float32, -bound, bound)
    bias = jax.random.uniform(kb, (Cout,), jnp.float32, -bound, bound)

    # Hoisted weight prep: once per weight set, reused across all forwards.
    w_band, b_row = prepare_conv_params(weight, bias, W)

    conv = jax.jit(normal_conv2d)
    out = jax.block_until_ready(conv(x, w_band, b_row))
    assert out.shape == (N, Cout, H, W)

    def conv_ref(xx, ww):
        return lax.conv_general_dilated(
            xx, ww, window_strides=(1, 1), padding=((1, 1), (1, 1)),
            dimension_numbers=("NCHW", "OIHW", "NCHW"),
            precision=lax.Precision.HIGHEST,
        ) + bias.reshape(1, Cout, 1, 1)

    # Tight check: same bf16 rounding of the MXU inputs as the kernel, f32 math.
    ref_bf16_in = conv_ref(x.astype(jnp.bfloat16).astype(jnp.float32),
                           weight.astype(jnp.bfloat16).astype(jnp.float32))
    assert jnp.allclose(out, ref_bf16_in, rtol=1e-3, atol=1e-3)

    # Loose check vs the full-f32 reference: difference is bf16 input quantization.
    ref_f32 = conv_ref(x, weight)
    assert jnp.allclose(out, ref_f32, rtol=2e-2, atol=2e-2)

    print("KERNEL_OK")
</pallas_src>

<mosaic_0001>
module attributes {stable_mosaic.version = 11 : i64} {
  func.func @_conv3x3_kernel(%arg0: i32, %arg1: memref<32x64xbf16, #tpu.memory_space<vmem>>, %arg2: memref<192x128xbf16, #tpu.memory_space<vmem>>, %arg3: memref<1x128xf32, #tpu.memory_space<vmem>>, %arg4: memref<32x128xf32, #tpu.memory_space<vmem>>) attributes {dimension_semantics = [#tpu.dimension_semantics<parallel>], iteration_bounds = array<i64: 1>, scalar_prefetch = 0 : i64, scratch_operands = 0 : i64, tpu.core_type = #tpu.core_type<tc>, window_params = [{transform_indices = @transform_0, window_bounds = array<i64: 32, 64>}, {pipeline_mode = #tpu.pipeline_mode<synchronous>, transform_indices = @transform_1, window_bounds = array<i64: 192, 128>}, {pipeline_mode = #tpu.pipeline_mode<synchronous>, transform_indices = @transform_2, window_bounds = array<i64: 1, 128>}, {transform_indices = @transform_3, window_bounds = array<i64: 32, 128>}]} {
    %c0 = arith.constant 0 : index
    %c0_0 = arith.constant 0 : index
    %0 = vector.load %arg1[%c0, %c0_0] : memref<32x64xbf16, #tpu.memory_space<vmem>>, vector<32x64xbf16>
    %cst = arith.constant 0.000000e+00 : bf16
    %1 = vector.broadcast %cst : bf16 to vector<1x64xbf16>
    %2 = vector.extract_strided_slice %0 {offsets = [0, 0], sizes = [31, 64], strides = [1, 1]} : vector<32x64xbf16> to vector<31x64xbf16>
    %3 = tpu.concatenate %1, %2 in 0 : vector<1x64xbf16>, vector<31x64xbf16> -> vector<32x64xbf16>
    %4 = vector.extract_strided_slice %0 {offsets = [1, 0], sizes = [31, 64], strides = [1, 1]} : vector<32x64xbf16> to vector<31x64xbf16>
    %5 = tpu.concatenate %4, %1 in 0 : vector<31x64xbf16>, vector<1x64xbf16> -> vector<32x64xbf16>
    %6 = tpu.iota {dimensions = array<i32: 0>} : vector<32x64xi32>
    %c16_i32 = arith.constant 16 : i32
    %c0_i32 = arith.constant 0 : i32
    %7 = arith.cmpi eq, %c16_i32, %c0_i32 : i32
    %c1_i32 = arith.constant 1 : i32
    %8 = arith.select %7, %c1_i32, %c16_i32 : i32
    %9 = vector.broadcast %8 : i32 to vector<32x64xi32>
    %10 = arith.remsi %6, %9 : vector<32x64xi32>
    %c0_i32_1 = arith.constant 0 : i32
    %11 = vector.broadcast %c0_i32_1 : i32 to vector<32x64xi32>
    %12 = arith.cmpi ne, %10, %11 : vector<32x64xi32>
    %c0_i32_2 = arith.constant 0 : i32
    %13 = vector.broadcast %c0_i32_2 : i32 to vector<32x64xi32>
    %14 = arith.cmpi slt, %10, %13 : vector<32x64xi32>
    %c0_i32_3 = arith.constant 0 : i32
    %15 = arith.cmpi slt, %8, %c0_i32_3 : i32
    %16 = vector.broadcast %15 : i1 to vector<32x64xi1>
    %17 = vector.broadcast %16 : vector<32x64xi1> to vector<32x64xi1>
    %18 = arith.xori %14, %17 : vector<32x64xi1>
    %19 = arith.andi %18, %12 : vector<32x64xi1>
    %20 = vector.broadcast %8 : i32 to vector<32x64xi32>
    %21 = arith.addi %10, %20 : vector<32x64xi32>
    %22 = arith.select %19, %21, %10 : vector<32x64xi1>, vector<32x64xi32>
    %c0_i32_4 = arith.constant 0 : i32
    %23 = vector.broadcast %c0_i32_4 : i32 to vector<32x64xi32>
    %24 = arith.cmpi ne, %22, %23 : vector<32x64xi32>
    %cst_5 = arith.constant 0.000000e+00 : bf16
    %25 = vector.broadcast %cst_5 : bf16 to vector<32x64xbf16>
    %26 = arith.select %24, %3, %25 : vector<32x64xi1>, vector<32x64xbf16>
    %c15_i32 = arith.constant 15 : i32
    %27 = vector.broadcast %c15_i32 : i32 to vector<32x64xi32>
    %28 = arith.cmpi ne, %22, %27 : vector<32x64xi32>
    %cst_6 = arith.constant 0.000000e+00 : bf16
    %29 = vector.broadcast %cst_6 : bf16 to vector<32x64xbf16>
    %30 = arith.select %28, %5, %29 : vector<32x64xi1>, vector<32x64xbf16>
    %31 = tpu.concatenate %26, %0, %30 in 1 : vector<32x64xbf16>, vector<32x64xbf16>, vector<32x64xbf16> -> vector<32x192xbf16>
    %c0_7 = arith.constant 0 : index
    %c0_8 = arith.constant 0 : index
    %32 = vector.load %arg2[%c0_7, %c0_8] : memref<192x128xbf16, #tpu.memory_space<vmem>>, vector<192x128xbf16>
    %cst_9 = arith.constant dense<0.000000e+00> : vector<32x128xf32>
    %33 = tpu.matmul %31, %32, %cst_9 {dimension_numbers = #tpu.dot_dimension_numbers<[1], [0], [0], [1], [0, 0, 1, 1], [], []>} : vector<32x192xbf16>, vector<192x128xbf16>, vector<32x128xf32> -> vector<32x128xf32>
    %c0_10 = arith.constant 0 : index
    %c0_11 = arith.constant 0 : index
    %34 = vector.load %arg3[%c0_10, %c0_11] : memref<1x128xf32, #tpu.memory_space<vmem>>, vector<1x128xf32>
    %35 = vector.broadcast %34 : vector<1x128xf32> to vector<32x128xf32>
    %36 = arith.addf %33, %35 : vector<32x128xf32>
    %c0_12 = arith.constant 0 : index
    %c0_13 = arith.constant 0 : index
    %37 = vector.load %arg4[%c0_12, %c0_13] : memref<32x128xf32, #tpu.memory_space<vmem>>, vector<32x128xf32>
    tpu.vector_store %arg4[%c0_12, %c0_13], %36 {strides = array<i32>} : memref<32x128xf32, #tpu.memory_space<vmem>>, vector<32x128xf32>,
    return
  }
  func.func @transform_0(%arg0: i32) -> (i32, i32) {
    %c0_i32 = arith.constant 0 : i32
    %c0_i32_0 = arith.constant 0 : i32
    return %arg0, %c0_i32 : i32, i32
  }
  func.func @transform_1(%arg0: i32) -> (i32, i32) {
    %c0_i32 = arith.constant 0 : i32
    %c0_i32_0 = arith.constant 0 : i32
    %c0_i32_1 = arith.constant 0 : i32
    return %c0_i32, %c0_i32_0 : i32, i32
  }
  func.func @transform_2(%arg0: i32) -> (i32, i32) {
    %c0_i32 = arith.constant 0 : i32
    %c0_i32_0 = arith.constant 0 : i32
    %c0_i32_1 = arith.constant 0 : i32
    return %c0_i32, %c0_i32_0 : i32, i32
  }
  func.func @transform_3(%arg0: i32) -> (i32, i32) {
    %c0_i32 = arith.constant 0 : i32
    %c0_i32_0 = arith.constant 0 : i32
    return %arg0, %c0_i32 : i32, i32
  }
}

</mosaic_0001>

<llo_original>
// kernel: normal_conv2d.1
$region0: #{normal_conv2d.1}
  #allocation0 [shape = 'u32[]', space=smem, size = 0x4, offset = 0x4, fixed_abs, tag = 'smem constant byte address 0x4 - core index']
  #allocation1 [shape = 'u32[72,128]{1,0:T(1,128)}', space=vmem, size = 0x9000, scoped, tag = 'internal scratch']
  %s0 = inlined_call_operand.vmem [shape: bf16[32,64], index: 0, kind: input, shape index: {}]
  %s1 = inlined_call_operand.vmem [shape: bf16[192,128], index: 1, kind: input, shape index: {}]
  %s2 = inlined_call_operand.vmem [shape: f32[1,128], index: 2, kind: input, shape index: {}]
  %s3 = inlined_call_operand.vmem [shape: f32[32,128], index: 3, kind: output, shape index: {}]
  %s4 = sld [smem:[#allocation0]]
  $region22: #{normal_conv2d.1} parent=0
    _
  %s6 = ssub.s32 1, %s4
  %s7 = scalar_select 0, %s6, %s4
  // Predicated region
  $region2: #{normal_conv2d.1} parent=0 // pred_check
    _
  $region3: #{normal_conv2d.1} parent=0 // pred_check_branch
    %9 = sbr.rel (0) target = $region5
  $region4: #{normal_conv2d.1} parent=0 // pred_region
    _
  $region5: #{normal_conv2d.1} parent=0 // pred_fallthru
    _
  // Predicated region
  $region6: #{normal_conv2d.1} parent=0 // pred_check
    _
  $region7: #{normal_conv2d.1} parent=0 // pred_check_branch
    %11 = sbr.rel (0) target = $region9
  $region8: #{normal_conv2d.1} parent=0 // pred_region
    _
  $region9: #{normal_conv2d.1} parent=0 // pred_fallthru
    _
  // Predicated region
  $region10: #{normal_conv2d.1} parent=0 // pred_check
    _
  $region11: #{normal_conv2d.1} parent=0 // pred_check_branch
    %13 = sbr.rel (0) target = $region13
  $region12: #{normal_conv2d.1} parent=0 // pred_region
    _
  $region13: #{normal_conv2d.1} parent=0 // pred_fallthru
    _
  %v17 = vld [vmem:[%s0] sm:$0xf]
  %v18 = vld [vmem:[%s0 + $0x4] sm:$0xf]
  %v19 = vld [vmem:[%s0 + $0x8] sm:$0xf]
  %v20 = vld [vmem:[%s0 + $0xc] sm:$0xf]
  %v25 = vunpack.c.l.b16 %v17
  %v26 = vunpack.c.l.b16 %v18
  %v27 = vunpack.c.l.b16 %v19
  %v28 = vunpack.c.l.b16 %v20
  %v29 = vpack.c.b16 %v26, %v25
  %v30 = vpack.c.b16 %v28, %v27
  %vm31 = vsmask.f32 256
  %v33 = vshrl.u32 %v29, 16
  %v35 = vrot.slane %v33, 7
  %v36 = vshll.u32 %v29, 16
  %v38 = vor.u32 %v35, %v36
  %v40 = vshrl.u32 %v30, 16
  %v42 = vrot.slane %v40, 7
  %v43 = vshll.u32 %v30, 16
  %v45 = vor.u32 %v42, %v43
  %v46 = vsel %vm31, %v35, %v45
  %vm49 = vcmask 1040384
  %vm50 = vmand %vm49, %vm31
  %v51 = vsel %vm50, 0, %v38
  %vm52 = vsmask.f32 7424
  %v53 = vrot.slane %v36, 1
  %v54 = vor.u32 %v33, %v53
  %v55 = vrot.slane %v43, 1
  %v56 = vsel %vm52, %v54, %v55
  %v57 = vor.u32 %v40, %v55
  %vm60 = vcmask 1047552
  %vm61 = vmand %vm60, %vm52
  %v62 = vsel %vm61, %v57, 0
  %v63 = vlaneseq
  %v64 = vshrl.u32 %v63, 7
  %v65 = vadd.s32 %v64, 8
  %v66 = vadd.s32 %v64, 16
  %v67 = vadd.s32 %v64, 24
  %vm68 = vcmp.lt.s32.totalorder %v64, 0
  %v69 = vsub.s32 0, %v64
  %v70 = vsel %vm68, %v69, %v64
  %v71 = vshrl.u32 %v70, 4
  %v72 = vand.u32 %v70, 15
  %v73 = vsub.s32 0, %v72
  %v74 = vsel %vm68, %v73, %v72
  %vm75 = vcmp.lt.s32.totalorder %v65, 0
  %v76 = vsub.s32 0, %v65
  %v77 = vsel %vm75, %v76, %v65
  %v78 = vshrl.u32 %v77, 4
  %v79 = vand.u32 %v77, 15
  %v80 = vsub.s32 0, %v79
  %v81 = vsel %vm75, %v80, %v79
  %vm82 = vcmp.lt.s32.totalorder %v66, 0
  %v83 = vsub.s32 0, %v66
  %v84 = vsel %vm82, %v83, %v66
  %v85 = vshrl.u32 %v84, 4
  %v86 = vand.u32 %v84, 15
  %v87 = vsub.s32 0, %v86
  %v88 = vsel %vm82, %v87, %v86
  %vm89 = vcmp.lt.s32.totalorder %v67, 0
  %v90 = vsub.s32 0, %v67
  %v91 = vsel %vm89, %v90, %v67
  %v92 = vshrl.u32 %v91, 4
  %v93 = vand.u32 %v91, 15
  %v94 = vsub.s32 0, %v93
  %v95 = vsel %vm89, %v94, %v93
  %vm96 = vcmp.ne.s32.totalorder %v74, 0
  %vm97 = vcmp.ne.s32.totalorder %v81, 0
  %vm98 = vcmp.ne.s32.totalorder %v88, 0
  %vm99 = vcmp.ne.s32.totalorder %v95, 0
  %vm100 = vcmp.lt.s32.totalorder %v74, 0
  %vm101 = vcmp.lt.s32.totalorder %v81, 0
  %vm102 = vcmp.lt.s32.totalorder %v88, 0
  %vm103 = vcmp.lt.s32.totalorder %v95, 0
  %vm104 = vmand %vm100, %vm96
  %vm105 = vmand %vm101, %vm97
  %vm106 = vmand %vm102, %vm98
  %vm107 = vmand %vm103, %vm99
  %v108 = vadd.s32 %v74, 16
  %v109 = vadd.s32 %v81, 16
  %v110 = vadd.s32 %v88, 16
  %v111 = vadd.s32 %v95, 16
  %v112 = vsel %vm104, %v108, %v74
  %v113 = vsel %vm105, %v109, %v81
  %v114 = vsel %vm106, %v110, %v88
  %v115 = vsel %vm107, %v111, %v95
  %vm116 = vcmp.ne.s32.totalorder %v112, 0
  %vm117 = vcmp.ne.s32.totalorder %v113, 0
  %vm118 = vcmp.ne.s32.totalorder %v114, 0
  %vm119 = vcmp.ne.s32.totalorder %v115, 0
  %vm120 = vmpackc.low %vm116, %vm116
  %vm121 = vmpackc.low %vm117, %vm117
  %vm122 = vmpackc.low %vm118, %vm118
  %vm123 = vmpackc.low %vm119, %vm119
  %v124 = vsel %vm120, 65537, 0
  %v125 = vsel %vm121, 65537, 0
  %v126 = vsel %vm122, 65537, 0
  %v127 = vsel %vm123, 65537, 0
  %v128 = vunpack.c.l.b16 %v124
  %v129 = vunpack.c.l.b16 %v125
  %v130 = vunpack.c.l.b16 %v126
  %v131 = vunpack.c.l.b16 %v127
  %v132 = vpack.c.b16 %v129, %v128
  %v133 = vpack.c.b16 %v131, %v130
  %v134 = vunpack.c.l.b16 %v132
  %v135 = vunpack.c.h.b16 %v132
  %v136 = vunpack.c.l.b16 0
  %v137 = vunpack.c.h.b16 0
  %vm138 = vcmp.ne.s32.totalorder %v134, %v136
  %vm139 = vcmp.ne.s32.totalorder %v135, %v137
  %vm140 = vmpackc.low %vm139, %vm138
  %v141 = vunpack.c.l.b16 %v133
  %v142 = vunpack.c.h.b16 %v133
  %v143 = vunpack.c.l.b16 0
  %v144 = vunpack.c.h.b16 0
  %vm145 = vcmp.ne.s32.totalorder %v141, %v143
  %vm146 = vcmp.ne.s32.totalorder %v142, %v144
  %vm147 = vmpackc.low %vm146, %vm145
  %v148 = vsel %vm140, %v51, 0
  %v149 = vsel %vm147, %v46, 0
  %vm150 = vcmp.ne.s32.totalorder %v112, 15
  %vm151 = vcmp.ne.s32.totalorder %v113, 15
  %vm152 = vcmp.ne.s32.totalorder %v114, 15
  %vm153 = vcmp.ne.s32.totalorder %v115, 15
  %vm154 = vmpackc.low %vm150, %vm150
  %vm155 = vmpackc.low %vm151, %vm151
  %vm156 = vmpackc.low %vm152, %vm152
  %vm157 = vmpackc.low %vm153, %vm153
  %v158 = vsel %vm154, 65537, 0
  %v159 = vsel %vm155, 65537, 0
  %v160 = vsel %vm156, 65537, 0
  %v161 = vsel %vm157, 65537, 0
  %v162 = vunpack.c.l.b16 %v158
  %v163 = vunpack.c.l.b16 %v159
  %v164 = vunpack.c.l.b16 %v160
  %v165 = vunpack.c.l.b16 %v161
  %v166 = vpack.c.b16 %v163, %v162
  %v167 = vpack.c.b16 %v165, %v164
  %v168 = vunpack.c.l.b16 %v166
  %v169 = vunpack.c.h.b16 %v166
  %v170 = vunpack.c.l.b16 0
  %v171 = vunpack.c.h.b16 0
  %vm172 = vcmp.ne.s32.totalorder %v168, %v170
  %vm173 = vcmp.ne.s32.totalorder %v169, %v171
  %vm174 = vmpackc.low %vm173, %vm172
  %v175 = vunpack.c.l.b16 %v167
  %v176 = vunpack.c.h.b16 %v167
  %v177 = vunpack.c.l.b16 0
  %v178 = vunpack.c.h.b16 0
  %vm179 = vcmp.ne.s32.totalorder %v175, %v177
  %vm180 = vcmp.ne.s32.totalorder %v176, %v178
  %vm181 = vmpackc.low %vm180, %vm179
  %v182 = vsel %vm174, %v56, 0
  %v183 = vsel %vm181, %v62, 0
  %184 = vrot.lane.b32.xlu0 %v29, 64
  %v185 = vpop.permute.xlu0 %184
  %186 = vrot.lane.b32.xlu0 %v30, 64
  %v187 = vpop.permute.xlu0 %186
  %vm188 = vcmask 523264
  %v191 = vsel %vm188, %v148, %v185
  %v195 = vsel %vm188, %v149, %v187
  %v197 = vld [vmem:[%s1] sm:$0xf]
  %v198 = vld [vmem:[%s1 + $0x4] sm:$0xf]
  %v199 = vld [vmem:[%s1 + $0x8] sm:$0xf]
  %v200 = vld [vmem:[%s1 + $0xc] sm:$0xf]
  %v201 = vld [vmem:[%s1 + $0x10] sm:$0xf]
  %v202 = vld [vmem:[%s1 + $0x14] sm:$0xf]
  %v203 = vld [vmem:[%s1 + $0x18] sm:$0xf]
  %v204 = vld [vmem:[%s1 + $0x1c] sm:$0xf]
  %v205 = vld [vmem:[%s1 + $0x20] sm:$0xf]
  %v206 = vld [vmem:[%s1 + $0x24] sm:$0xf]
  %v207 = vld [vmem:[%s1 + $0x28] sm:$0xf]
  %v208 = vld [vmem:[%s1 + $0x2c] sm:$0xf]
  %v209 = vld [vmem:[%s1 + $0x30] sm:$0xf]
  %v210 = vld [vmem:[%s1 + $0x34] sm:$0xf]
  %v211 = vld [vmem:[%s1 + $0x38] sm:$0xf]
  %v212 = vld [vmem:[%s1 + $0x3c] sm:$0xf]
  %v213 = vld [vmem:[%s1 + $0x40] sm:$0xf]
  %v214 = vld [vmem:[%s1 + $0x44] sm:$0xf]
  %v215 = vld [vmem:[%s1 + $0x48] sm:$0xf]
  %v216 = vld [vmem:[%s1 + $0x4c] sm:$0xf]
  %v217 = vld [vmem:[%s1 + $0x50] sm:$0xf]
  %v218 = vld [vmem:[%s1 + $0x54] sm:$0xf]
  %v219 = vld [vmem:[%s1 + $0x58] sm:$0xf]
  %v220 = vld [vmem:[%s1 + $0x5c] sm:$0xf]
  %v221 = vld [vmem:[%s2] sm:$0x1]
  %v223 = vperm.slane %v221, 0
  %v249 = vunpack.c.l.b16 %v197
  %v250 = vunpack.c.l.b16 %v198
  %v251 = vunpack.c.l.b16 %v199
  %v252 = vunpack.c.l.b16 %v200
  %v253 = vunpack.c.l.b16 %v201
  %v254 = vunpack.c.l.b16 %v202
  %v255 = vunpack.c.l.b16 %v203
  %v256 = vunpack.c.l.b16 %v204
  %v257 = vunpack.c.l.b16 %v205
  %v258 = vunpack.c.l.b16 %v206
  %v259 = vunpack.c.l.b16 %v207
  %v260 = vunpack.c.l.b16 %v208
  %v261 = vunpack.c.l.b16 %v209
  %v262 = vunpack.c.l.b16 %v210
  %v263 = vunpack.c.l.b16 %v211
  %v264 = vunpack.c.l.b16 %v212
  %v265 = vunpack.c.l.b16 %v213
  %v266 = vunpack.c.l.b16 %v214
  %v267 = vunpack.c.l.b16 %v215
  %v268 = vunpack.c.l.b16 %v216
  %v269 = vunpack.c.l.b16 %v217
  %v270 = vunpack.c.l.b16 %v218
  %v271 = vunpack.c.l.b16 %v219
  %v272 = vunpack.c.l.b16 %v220
  %v273 = vpack.c.b16 %v250, %v249
  %v274 = vpack.c.b16 %v252, %v251
  %v275 = vpack.c.b16 %v254, %v253
  %v276 = vpack.c.b16 %v256, %v255
  %v277 = vpack.c.b16 %v258, %v257
  %v278 = vpack.c.b16 %v260, %v259
  %v279 = vpack.c.b16 %v262, %v261
  %v280 = vpack.c.b16 %v264, %v263
  %v281 = vpack.c.b16 %v266, %v265
  %v282 = vpack.c.b16 %v268, %v267
  %v283 = vpack.c.b16 %v270, %v269
  %v284 = vpack.c.b16 %v272, %v271
  %v298 = vsel %vm188, %v182, 0
  %v301 = vsel %vm188, %v183, 0
  %303 = vmatpush.bf16.msra.mxu0 %v280
  %304 = vmatpush.bf16.msra.mxu0 %v279
  %305 = vmatpush.bf16.msra.mxu0 %v278
  %306 = vmatpush.bf16.msra.mxu0 %v277
  %307 = vmatpush.bf16.msra.mxu0 %v276
  %308 = vmatpush.bf16.msra.mxu0 %v275
  %309 = vmatpush.bf16.msra.mxu0 %v274
  %310 = vmatpush.bf16.msra.mxu0 %v273
  %311 = vmatmul.bf16.gmra.mxu0 %v191
  %v312 = vpop.f32.mrf.mxu0
  %v313 = vadd.f32 %v223, %v312
  %v314 = vpop.f32.mrf.mxu0
  %v315 = vadd.f32 %v223, %v314
  %316 = vmatmul.bf16.gmra.mxu0 %v195
  %v317 = vpop.f32.mrf.mxu0
  %v318 = vadd.f32 %v223, %v317
  %v319 = vpop.f32.mrf.mxu0
  %v320 = vadd.f32 %v223, %v319
  %321 = vdwg.mxu0
  %322 = vmatpush.bf16.msra.mxu0 0
  %323 = vmatpush.bf16.msra.mxu0 0
  %324 = vmatpush.bf16.msra.mxu0 0
  %325 = vmatpush.bf16.msra.mxu0 0
  %326 = vmatpush.bf16.msra.mxu0 %v284
  %327 = vmatpush.bf16.msra.mxu0 %v283
  %328 = vmatpush.bf16.msra.mxu0 %v282
  %329 = vmatpush.bf16.msra.mxu0 %v281
  %330 = vmatmul.bf16.gmra.mxu0 %v298
  %v331 = vpop.f32.mrf.mxu0
  %v332 = vadd.f32 %v313, %v331
  %v333 = vpop.f32.mrf.mxu0
  %v334 = vadd.f32 %v315, %v333
  %335 = vmatmul.bf16.gmra.mxu0 %v301
  %v336 = vpop.f32.mrf.mxu0
  %v337 = vadd.f32 %v318, %v336
  %v338 = vpop.f32.mrf.mxu0
  %v339 = vadd.f32 %v320, %v338
  %340 = vdwg.mxu0
  %341 = vst [vmem:[%s3] sm:$0xff] %v332
  %342 = vst [vmem:[%s3 + $0x8] sm:$0xff] %v334
  %343 = vst [vmem:[%s3 + $0x10] sm:$0xff] %v337
  %344 = vst [vmem:[%s3 + $0x18] sm:$0xff] %v339
  // Predicated region
  $region14: #{normal_conv2d.1} parent=0 // pred_check
    _
  $region15: #{normal_conv2d.1} parent=0 // pred_check_branch
    %346 = sbr.rel (0) target = $region17
  $region16: #{normal_conv2d.1} parent=0 // pred_region
    _
  $region17: #{normal_conv2d.1} parent=0 // pred_fallthru
    _
  // Predicated region
  $region18: #{normal_conv2d.1} parent=0 // pred_check
    _
  $region19: #{normal_conv2d.1} parent=0 // pred_check_branch
    %348 = sbr.rel (0) target = $region21
  $region20: #{normal_conv2d.1} parent=0 // pred_region
    _
  $region21: #{normal_conv2d.1} parent=0 // pred_fallthru
    _

</llo_original>
